<compile_context>
chip_gen: v5e
topology: v5e:2x2
jax: 0.10.0
libtpu: 0.0.40
codegen_flags: <defaults>
</compile_context>

<pallas_src>
import jax
import jax.numpy as jnp
from jax import lax
from jax.experimental import pallas as pl
from jax.experimental.pallas import tpu as pltpu


# dot_general dimension numbers contracting the LAST dim of both operands
# (A @ B.T) — the same pattern the reference flash-attention kernels use.
_NT = (((1,), (1,)), ((), ()))


def whole_neumf_kernel(zi_ref, zj_ref, w2a_ref, w2b_ref, w3a_ref, w3b_ref, out_ref):
    f32 = jnp.float32
    zi = zi_ref[...]                 # (tm, D)  rows of this output tile
    zj = zj_ref[...]                 # (tn, D)  cols of this output tile
    w3a = w3a_ref[...]               # (1, D)   W3[:D] as a lane-dense row
    w3b = w3b_ref[...]               # (1, D)   W3[D:] as a lane-dense row

    # Fold W2 with w3a (D*D flops per tile, negligible vs. the main matmul):
    #   wfa[d] = sum_c W2[d, c]   * w3a[c]
    #   wfb[d] = sum_c W2[D+d, c] * w3a[c]
    wfa = lax.dot_general(w3a, w2a_ref[...], _NT, preferred_element_type=f32)  # (1, D)
    wfb = lax.dot_general(w3a, w2b_ref[...], _NT, preferred_element_type=f32)  # (1, D)

    # Per-node MLP-path contributions.
    a_col = jnp.sum(jnp.maximum(zi, 0.0) * wfa, axis=1, keepdims=True)         # (tm, 1)
    b_row = lax.dot_general(wfb, jnp.maximum(zj, 0.0), _NT,
                            preferred_element_type=f32)                        # (1, tn)

    # GMF path: (zi * w3b) @ zj.T — the only big matmul (MXU).
    gmf = lax.dot_general(zi * w3b, zj, _NT, preferred_element_type=f32)       # (tm, tn)

    out_ref[...] = jax.nn.sigmoid(gmf + a_col + b_row)


def _round_up(x, m):
    return ((x + m - 1) // m) * m


@jax.jit
def whole_neumf_forward(z_emb, weight_two, weight_three):
    """All-pairs NEUMF scores: sigmoid score matrix of shape (N, N)."""
    N, D = z_emb.shape
    assert weight_two.shape == (2 * D, D)
    assert weight_three.shape == (2 * D, 1)

    # Tile the (N, N) output lane-dense; pad N to the tile so every block
    # satisfies the (8, 128) layout constraint.
    if N >= 128:
        tile = 128
        n_pad = _round_up(N, tile)
    else:
        n_pad = _round_up(N, 8)
        tile = n_pad
    if n_pad != N:
        z_p = jnp.zeros((n_pad, D), z_emb.dtype).at[:N, :].set(z_emb)
    else:
        z_p = z_emb

    # Split the weights once so the kernel never slices at unaligned offsets;
    # w3 halves are passed as lane-dense (1, D) rows.
    w2a = weight_two[:D, :]                      # (D, D)
    w2b = weight_two[D:, :]                      # (D, D)
    w3a = weight_three[:D, :].reshape(1, D)      # (1, D)
    w3b = weight_three[D:, :].reshape(1, D)      # (1, D)

    gsz = n_pad // tile
    const = lambda shape: pl.BlockSpec(shape, lambda i, j: (0, 0))

    out = pl.pallas_call(
        whole_neumf_kernel,
        grid=(gsz, gsz),
        in_specs=[
            pl.BlockSpec((tile, D), lambda i, j: (i, 0)),   # zi: row block
            pl.BlockSpec((tile, D), lambda i, j: (j, 0)),   # zj: col block
            const((D, D)),                                  # W2[:D]  (resident)
            const((D, D)),                                  # W2[D:]  (resident)
            const((1, D)),                                  # w3a row (resident)
            const((1, D)),                                  # w3b row (resident)
        ],
        out_specs=pl.BlockSpec((tile, tile), lambda i, j: (i, j)),
        out_shape=jax.ShapeDtypeStruct((n_pad, n_pad), jnp.float32),
        compiler_params=pltpu.CompilerParams(
            dimension_semantics=("parallel", "parallel")),   # megacore on v7x
    )(z_p, z_p, w2a, w2b, w3a, w3b)

    return out[:N, :N]


def reference_forward(z_emb, weight_two, weight_three):
    """Pure-JAX replica of the PyTorch forward (materializes all N*N pairs)."""
    N, D = z_emb.shape
    hp = jax.lax.Precision.HIGHEST
    z1 = jnp.repeat(z_emb, N, axis=0)            # z1[i*N + j] = z[i]
    z2 = jnp.tile(z_emb, (N, 1))                 # z2[i*N + j] = z[j]
    z_pair = jax.nn.relu(jnp.concatenate([z1, z2], axis=1))
    z_mult = z1 * z2
    z_pair = jnp.dot(z_pair, weight_two, precision=hp)
    s = jnp.dot(jnp.concatenate([z_pair, z_mult], axis=1), weight_three, precision=hp)
    return jax.nn.sigmoid(s.reshape(N, N))


if __name__ == "__main__":
    key = jax.random.PRNGKey(0)
    k_z, k_w2, k_w3 = jax.random.split(key, 3)

    num_nodes = 256      # input_dim == args.node_size in the original module
    hidden = 32          # output_dim

    # normal_init: Embedding weight ~ N(0, 0.01^2)
    z_emb = 0.01 * jax.random.normal(k_z, (num_nodes, hidden), dtype=jnp.float32)

    # xavier_uniform for weight_two (2D, D): bound = sqrt(6 / (2D + D))
    xav = (6.0 / (3 * hidden)) ** 0.5
    weight_two = jax.random.uniform(k_w2, (2 * hidden, hidden),
                                    minval=-xav, maxval=xav, dtype=jnp.float32)

    # kaiming_uniform(a=1, sigmoid) for weight_three (2D, 1)
    kai = (3.0 / (2 * hidden)) ** 0.5
    weight_three = jax.random.uniform(k_w3, (2 * hidden, 1),
                                      minval=-kai, maxval=kai, dtype=jnp.float32)

    out = whole_neumf_forward(z_emb, weight_two, weight_three)
    out = jax.block_until_ready(out)

    ref = reference_forward(z_emb, weight_two, weight_three)
    assert out.shape == (num_nodes, num_nodes)
    assert jnp.allclose(out, ref, atol=1e-5, rtol=1e-5), float(jnp.max(jnp.abs(out - ref)))

    print("KERNEL_OK")
</pallas_src>

<mosaic_0001>
module attributes {stable_mosaic.version = 11 : i64} {
  func.func @whole_neumf_kernel(%arg0: i32, %arg1: i32, %arg2: memref<128x32xf32, #tpu.memory_space<vmem>>, %arg3: memref<128x32xf32, #tpu.memory_space<vmem>>, %arg4: memref<32x32xf32, #tpu.memory_space<vmem>>, %arg5: memref<32x32xf32, #tpu.memory_space<vmem>>, %arg6: memref<1x32xf32, #tpu.memory_space<vmem>>, %arg7: memref<1x32xf32, #tpu.memory_space<vmem>>, %arg8: memref<128x128xf32, #tpu.memory_space<vmem>>) attributes {dimension_semantics = [#tpu.dimension_semantics<parallel>, #tpu.dimension_semantics<parallel>], iteration_bounds = array<i64: 2, 2>, scalar_prefetch = 0 : i64, scratch_operands = 0 : i64, tpu.core_type = #tpu.core_type<tc>, window_params = [{transform_indices = @transform_0, window_bounds = array<i64: 128, 32>}, {transform_indices = @transform_1, window_bounds = array<i64: 128, 32>}, {pipeline_mode = #tpu.pipeline_mode<synchronous>, transform_indices = @transform_2, window_bounds = array<i64: 32, 32>}, {pipeline_mode = #tpu.pipeline_mode<synchronous>, transform_indices = @transform_3, window_bounds = array<i64: 32, 32>}, {pipeline_mode = #tpu.pipeline_mode<synchronous>, transform_indices = @transform_4, window_bounds = array<i64: 1, 32>}, {pipeline_mode = #tpu.pipeline_mode<synchronous>, transform_indices = @transform_5, window_bounds = array<i64: 1, 32>}, {transform_indices = @transform_6, window_bounds = array<i64: 128, 128>}]} {
    %c0 = arith.constant 0 : index
    %c0_0 = arith.constant 0 : index
    %0 = vector.load %arg2[%c0, %c0_0] : memref<128x32xf32, #tpu.memory_space<vmem>>, vector<128x32xf32>
    %c0_1 = arith.constant 0 : index
    %c0_2 = arith.constant 0 : index
    %1 = vector.load %arg3[%c0_1, %c0_2] : memref<128x32xf32, #tpu.memory_space<vmem>>, vector<128x32xf32>
    %c0_3 = arith.constant 0 : index
    %c0_4 = arith.constant 0 : index
    %2 = vector.load %arg6[%c0_3, %c0_4] : memref<1x32xf32, #tpu.memory_space<vmem>>, vector<1x32xf32>
    %c0_5 = arith.constant 0 : index
    %c0_6 = arith.constant 0 : index
    %3 = vector.load %arg7[%c0_5, %c0_6] : memref<1x32xf32, #tpu.memory_space<vmem>>, vector<1x32xf32>
    %c0_7 = arith.constant 0 : index
    %c0_8 = arith.constant 0 : index
    %4 = vector.load %arg4[%c0_7, %c0_8] : memref<32x32xf32, #tpu.memory_space<vmem>>, vector<32x32xf32>
    %cst = arith.constant dense<0.000000e+00> : vector<1x32xf32>
    %5 = tpu.matmul %2, %4, %cst {dimension_numbers = #tpu.dot_dimension_numbers<[1], [1], [0], [0], [0, 0, 1, 0], [], []>} : vector<1x32xf32>, vector<32x32xf32>, vector<1x32xf32> -> vector<1x32xf32>
    %c0_9 = arith.constant 0 : index
    %c0_10 = arith.constant 0 : index
    %6 = vector.load %arg5[%c0_9, %c0_10] : memref<32x32xf32, #tpu.memory_space<vmem>>, vector<32x32xf32>
    %cst_11 = arith.constant dense<0.000000e+00> : vector<1x32xf32>
    %7 = tpu.matmul %2, %6, %cst_11 {dimension_numbers = #tpu.dot_dimension_numbers<[1], [1], [0], [0], [0, 0, 1, 0], [], []>} : vector<1x32xf32>, vector<32x32xf32>, vector<1x32xf32> -> vector<1x32xf32>
    %cst_12 = arith.constant 0.000000e+00 : f32
    %8 = vector.broadcast %cst_12 : f32 to vector<128x32xf32>
    %9 = arith.maximumf %0, %8 : vector<128x32xf32>
    %10 = vector.broadcast %5 : vector<1x32xf32> to vector<128x32xf32>
    %11 = arith.mulf %9, %10 : vector<128x32xf32>
    %cst_13 = arith.constant dense<0.000000e+00> : vector<128xf32>
    %12 = vector.multi_reduction <add>, %11, %cst_13 [1] : vector<128x32xf32> to vector<128xf32>
    %13 = vector.shape_cast %12 : vector<128xf32> to vector<128x1xf32>
    %cst_14 = arith.constant 0.000000e+00 : f32
    %14 = vector.broadcast %cst_14 : f32 to vector<128x32xf32>
    %15 = arith.maximumf %1, %14 : vector<128x32xf32>
    %cst_15 = arith.constant dense<0.000000e+00> : vector<1x128xf32>
    %16 = tpu.matmul %7, %15, %cst_15 {dimension_numbers = #tpu.dot_dimension_numbers<[1], [1], [0], [0], [0, 0, 1, 0], [], []>} : vector<1x32xf32>, vector<128x32xf32>, vector<1x128xf32> -> vector<1x128xf32>
    %17 = vector.broadcast %3 : vector<1x32xf32> to vector<128x32xf32>
    %18 = arith.mulf %0, %17 : vector<128x32xf32>
    %cst_16 = arith.constant dense<0.000000e+00> : vector<128x128xf32>
    %19 = tpu.matmul %18, %1, %cst_16 {dimension_numbers = #tpu.dot_dimension_numbers<[1], [1], [0], [0], [0, 0, 1, 0], [], []>} : vector<128x32xf32>, vector<128x32xf32>, vector<128x128xf32> -> vector<128x128xf32>
    %20 = vector.broadcast %13 : vector<128x1xf32> to vector<128x128xf32>
    %21 = arith.addf %19, %20 : vector<128x128xf32>
    %22 = vector.broadcast %16 : vector<1x128xf32> to vector<128x128xf32>
    %23 = arith.addf %21, %22 : vector<128x128xf32>
    %24 = arith.negf %23 : vector<128x128xf32>
    %25 = math.exp %24 : vector<128x128xf32>
    %cst_17 = arith.constant 1.000000e+00 : f32
    %26 = vector.broadcast %cst_17 : f32 to vector<128x128xf32>
    %27 = arith.addf %26, %25 : vector<128x128xf32>
    %28 = arith.divf %26, %27 : vector<128x128xf32>
    %c0_18 = arith.constant 0 : index
    %c0_19 = arith.constant 0 : index
    %29 = vector.load %arg8[%c0_18, %c0_19] : memref<128x128xf32, #tpu.memory_space<vmem>>, vector<128x128xf32>
    tpu.vector_store %arg8[%c0_18, %c0_19], %28 {strides = array<i32>} : memref<128x128xf32, #tpu.memory_space<vmem>>, vector<128x128xf32>,
    return
  }
  func.func @transform_0(%arg0: i32, %arg1: i32) -> (i32, i32) {
    %c0_i32 = arith.constant 0 : i32
    %c0_i32_0 = arith.constant 0 : i32
    return %arg0, %c0_i32 : i32, i32
  }
  func.func @transform_1(%arg0: i32, %arg1: i32) -> (i32, i32) {
    %c0_i32 = arith.constant 0 : i32
    %c0_i32_0 = arith.constant 0 : i32
    return %arg1, %c0_i32 : i32, i32
  }
  func.func @transform_2(%arg0: i32, %arg1: i32) -> (i32, i32) {
    %c0_i32 = arith.constant 0 : i32
    %c0_i32_0 = arith.constant 0 : i32
    %c0_i32_1 = arith.constant 0 : i32
    return %c0_i32, %c0_i32_0 : i32, i32
  }
  func.func @transform_3(%arg0: i32, %arg1: i32) -> (i32, i32) {
    %c0_i32 = arith.constant 0 : i32
    %c0_i32_0 = arith.constant 0 : i32
    %c0_i32_1 = arith.constant 0 : i32
    return %c0_i32, %c0_i32_0 : i32, i32
  }
  func.func @transform_4(%arg0: i32, %arg1: i32) -> (i32, i32) {
    %c0_i32 = arith.constant 0 : i32
    %c0_i32_0 = arith.constant 0 : i32
    %c0_i32_1 = arith.constant 0 : i32
    return %c0_i32, %c0_i32_0 : i32, i32
  }
  func.func @transform_5(%arg0: i32, %arg1: i32) -> (i32, i32) {
    %c0_i32 = arith.constant 0 : i32
    %c0_i32_0 = arith.constant 0 : i32
    %c0_i32_1 = arith.constant 0 : i32
    return %c0_i32, %c0_i32_0 : i32, i32
  }
  func.func @transform_6(%arg0: i32, %arg1: i32) -> (i32, i32) {
    %c0_i32 = arith.constant 0 : i32
    return %arg0, %arg1 : i32, i32
  }
}

</mosaic_0001>

<llo_original>
// kernel: whole_neumf_forward.1
$region0: #{whole_neumf_forward.1}
  #allocation0 [shape = 'u32[]', space=smem, size = 0x4, offset = 0x4, fixed_abs, tag = 'smem constant byte address 0x4 - core index']
  #allocation1 [shape = 'u32[72,128]{1,0:T(1,128)}', space=vmem, size = 0x9000, scoped, tag = 'internal scratch']
  %s0 = inlined_call_operand.vmem [shape: f32[256,32], index: 0, kind: input, shape index: {}, may-alias: {0,1}]
  %s1 = inlined_call_operand.vmem [shape: f32[256,32], index: 1, kind: input, shape index: {}, may-alias: {0,1}]
  %s2 = inlined_call_operand.vmem [shape: f32[32,32], index: 2, kind: input, shape index: {}]
  %s3 = inlined_call_operand.vmem [shape: f32[32,32], index: 3, kind: input, shape index: {}]
  %s4 = inlined_call_operand.vmem [shape: f32[1,32], index: 4, kind: input, shape index: {}]
  %s5 = inlined_call_operand.vmem [shape: f32[1,32], index: 5, kind: input, shape index: {}]
  %s6 = inlined_call_operand.hbm [shape: f32[256,256], index: 6, kind: output, shape index: {}]
  %s7 = sld [smem:[#allocation0]]
  $region57: #{whole_neumf_forward.1} parent=0
    _
  %s9 = ssub.s32 1, %s7
  %s10 = scalar_select 0, %s9, %s7
  $region1: #{whole_neumf_forward.1} parent=0
    #allocation2 [shape = 'u8[131072]{0}', space=vmem, size = 0x20000, scoped, tag = 'output window, operand 0']
    #allocation3 [shape = 's32[2]{0}', space=sflag, size = 0x8, scoped, tag = 'scoped memory for whole_neumf_forward.1']
    %11 = vsyncpa [#allocation3], 0
    %s12 = scalar_lea.sflag [#allocation3], 1
    %13 = vsyncpa %s12, 0
    loop: start=0, step=1, limit=6
    $region2: #{whole_neumf_forward.1} parent=1 // loop_pre_header
      _
    $region3: #{whole_neumf_forward.1} parent=1 // loop_header
      %s15 = sphi 0, %s19
      %p16 = scmp.ge.s32.totalorder %s15, 6
      %s22 = sphi 0, %s34
      %s23 = sphi 0, %s30
      %s24 = sphi 0, %s22
      %s25 = sphi 0, %s23
      %s26 = sphi 0, %s24
      %s27 = sphi 0, %s25
      %s37 = sphi 0, %s39
      %s40 = sphi 0, %s37
      %s41 = sphi 0, %s40
      %s57 = sphi 0, %s41
      %s63 = sphi 0, %s65
      %s66 = sphi 0, %s63
      %s67 = sphi 0, %s66
      %s83 = sphi 0, %s67
      %s87 = sphi 0, %s87
      %s89 = sphi 0, %s87
      %s90 = sphi 0, %s89
      %s104 = sphi 0, %s90
      %s108 = sphi 0, %s108
      %s110 = sphi 0, %s108
      %s111 = sphi 0, %s110
      %s125 = sphi 0, %s111
      %s129 = sphi 0, %s129
      %s131 = sphi 0, %s129
      %s132 = sphi 0, %s131
      %s146 = sphi 0, %s132
      %s150 = sphi 0, %s150
      %s152 = sphi 0, %s150
      %s153 = sphi 0, %s152
      %s167 = sphi 0, %s153
      %s175 = sphi 0, %s177
      %s178 = sphi 0, %s175
      %s179 = sphi 0, %s178
      %s195 = sphi 0, %s179
    $region4: #{whole_neumf_forward.1} parent=1 // loop_header_branch
      %18 = sbr.rel (%p16) target = $region8
    $region5: #{whole_neumf_forward.1} parent=1 // loop_body
      %s20 = ssub.s32 %s15, 1
      %s21 = ssub.s32 %s15, 2
      %s28 = sadd.s32 1, %s23
      %p29 = scmp.ge.s32.totalorder %s28, 2
      %s30 = scalar_select %p29, 0, %s28
      %s31 = sadd.s32 1, %s22
      %s32 = scalar_select %p29, %s31, %s22
      %p33 = scmp.ge.s32.totalorder %s32, 2
      %s34 = scalar_select %p33, 0, %s32
      %s35 = ssub.s32 %s22, %s34
      %p36 = scmp.eq.s32.totalorder %s35, 0
      %s38 = sadd.s32 %s37, 1
      %s39 = scalar_select %p36, %s37, %s38
      %p42 = pneg %p36
      %p43 = scmp.eq.s32.totalorder %s15, 3
      %p44 = por %p42, %p43
      %p45 = scmp.ne.s32.totalorder %s37, %s40
      %p46 = scmp.eq.s32.totalorder %s15, 0
      %p47 = por %p45, %p46
      %p48 = scmp.ne.s32.totalorder %s37, %s40
      %p49 = scmp.eq.s32.totalorder %s20, 3
      %p50 = por %p48, %p49
      %p51 = scmp.ne.s32.totalorder %s40, %s41
      %p52 = scmp.eq.s32.totalorder %s20, 0
      %p53 = por %p51, %p52
      %p54 = scmp.ne.s32.totalorder %s40, %s41
      %p55 = scmp.eq.s32.totalorder %s21, 3
      %p56 = por %p54, %p55
      %p58 = scmp.ne.s32.totalorder %s41, %s57
      %p59 = scmp.eq.s32.totalorder %s21, 0
      %p60 = por %p58, %p59
      %s61 = ssub.s32 %s23, %s30
      %p62 = scmp.eq.s32.totalorder %s61, 0
      %s64 = sadd.s32 %s63, 1
      %s65 = scalar_select %p62, %s63, %s64
      %p68 = pneg %p62
      %p69 = scmp.eq.s32.totalorder %s15, 3
      %p70 = por %p68, %p69
      %p71 = scmp.ne.s32.totalorder %s63, %s66
      %p72 = scmp.eq.s32.totalorder %s15, 0
      %p73 = por %p71, %p72
      %p74 = scmp.ne.s32.totalorder %s63, %s66
      %p75 = scmp.eq.s32.totalorder %s20, 3
      %p76 = por %p74, %p75
      %p77 = scmp.ne.s32.totalorder %s66, %s67
      %p78 = scmp.eq.s32.totalorder %s20, 0
      %p79 = por %p77, %p78
      %p80 = scmp.ne.s32.totalorder %s66, %s67
      %p81 = scmp.eq.s32.totalorder %s21, 3
      %p82 = por %p80, %p81
      %p84 = scmp.ne.s32.totalorder %s67, %s83
      %p85 = scmp.eq.s32.totalorder %s21, 0
      %p86 = por %p84, %p85
      %s88 = sadd.s32 %s87, 1
      %p91 = scmp.eq.s32.totalorder %s15, 3
      %p92 = scmp.ne.s32.totalorder %s87, %s89
      %p93 = scmp.eq.s32.totalorder %s15, 0
      %p94 = por %p92, %p93
      %p95 = scmp.ne.s32.totalorder %s87, %s89
      %p96 = scmp.eq.s32.totalorder %s20, 3
      %p97 = por %p95, %p96
      %p98 = scmp.ne.s32.totalorder %s89, %s90
      %p99 = scmp.eq.s32.totalorder %s20, 0
      %p100 = por %p98, %p99
      %p101 = scmp.ne.s32.totalorder %s89, %s90
      %p102 = scmp.eq.s32.totalorder %s21, 3
      %p103 = por %p101, %p102
      %p105 = scmp.ne.s32.totalorder %s90, %s104
      %p106 = scmp.eq.s32.totalorder %s21, 0
      %p107 = por %p105, %p106
      %s109 = sadd.s32 %s108, 1
      %p112 = scmp.eq.s32.totalorder %s15, 3
      %p113 = scmp.ne.s32.totalorder %s108, %s110
      %p114 = scmp.eq.s32.totalorder %s15, 0
      %p115 = por %p113, %p114
      %p116 = scmp.ne.s32.totalorder %s108, %s110
      %p117 = scmp.eq.s32.totalorder %s20, 3
      %p118 = por %p116, %p117
      %p119 = scmp.ne.s32.totalorder %s110, %s111
      %p120 = scmp.eq.s32.totalorder %s20, 0
      %p121 = por %p119, %p120
      %p122 = scmp.ne.s32.totalorder %s110, %s111
      %p123 = scmp.eq.s32.totalorder %s21, 3
      %p124 = por %p122, %p123
      %p126 = scmp.ne.s32.totalorder %s111, %s125
      %p127 = scmp.eq.s32.totalorder %s21, 0
      %p128 = por %p126, %p127
      %s130 = sadd.s32 %s129, 1
      %p133 = scmp.eq.s32.totalorder %s15, 3
      %p134 = scmp.ne.s32.totalorder %s129, %s131
      %p135 = scmp.eq.s32.totalorder %s15, 0
      %p136 = por %p134, %p135
      %p137 = scmp.ne.s32.totalorder %s129, %s131
      %p138 = scmp.eq.s32.totalorder %s20, 3
      %p139 = por %p137, %p138
      %p140 = scmp.ne.s32.totalorder %s131, %s132
      %p141 = scmp.eq.s32.totalorder %s20, 0
      %p142 = por %p140, %p141
      %p143 = scmp.ne.s32.totalorder %s131, %s132
      %p144 = scmp.eq.s32.totalorder %s21, 3
      %p145 = por %p143, %p144
      %p147 = scmp.ne.s32.totalorder %s132, %s146
      %p148 = scmp.eq.s32.totalorder %s21, 0
      %p149 = por %p147, %p148
      %s151 = sadd.s32 %s150, 1
      %p154 = scmp.eq.s32.totalorder %s15, 3
      %p155 = scmp.ne.s32.totalorder %s150, %s152
      %p156 = scmp.eq.s32.totalorder %s15, 0
      %p157 = por %p155, %p156
      %p158 = scmp.ne.s32.totalorder %s150, %s152
      %p159 = scmp.eq.s32.totalorder %s20, 3
      %p160 = por %p158, %p159
      %p161 = scmp.ne.s32.totalorder %s152, %s153
      %p162 = scmp.eq.s32.totalorder %s20, 0
      %p163 = por %p161, %p162
      %p164 = scmp.ne.s32.totalorder %s152, %s153
      %p165 = scmp.eq.s32.totalorder %s21, 3
      %p166 = por %p164, %p165
      %p168 = scmp.ne.s32.totalorder %s153, %s167
      %p169 = scmp.eq.s32.totalorder %s21, 0
      %p170 = por %p168, %p169
      %s171 = ssub.s32 %s22, %s34
      %s172 = ssub.s32 %s23, %s30
      %s173 = sor.u32 %s171, %s172
      %p174 = scmp.eq.s32.totalorder %s173, 0
      %s176 = sadd.s32 %s175, 1
      %s177 = scalar_select %p174, %s175, %s176
      %p180 = pneg %p174
      %p181 = scmp.eq.s32.totalorder %s15, 3
      %p182 = por %p180, %p181
      %p183 = scmp.ne.s32.totalorder %s175, %s178
      %p184 = scmp.eq.s32.totalorder %s15, 0
      %p185 = por %p183, %p184
      %p186 = scmp.ne.s32.totalorder %s175, %s178
      %p187 = scmp.eq.s32.totalorder %s20, 3
      %p188 = por %p186, %p187
      %p189 = scmp.ne.s32.totalorder %s178, %s179
      %p190 = scmp.eq.s32.totalorder %s20, 0
      %p191 = por %p189, %p190
      %p192 = scmp.ne.s32.totalorder %s178, %s179
      %p193 = scmp.eq.s32.totalorder %s21, 3
      %p194 = por %p192, %p193
      %p196 = scmp.ne.s32.totalorder %s179, %s195
      %p197 = scmp.eq.s32.totalorder %s21, 0
      %p198 = por %p196, %p197
      %p199 = scmp.le.s32.totalorder 1, %s15
      %p200 = scmp.lt.s32.totalorder %s15, 5
      %p201 = pnand %p199, %p200
      %p202 = pneg %p201
      // Predicated region
      $region9: #{whole_neumf_forward.1} parent=5 // pred_check
        _
      $region10: #{whole_neumf_forward.1} parent=5 // pred_check_branch
        %204 = sbr.rel (%p201) target = $region12
      $region11: #{whole_neumf_forward.1} parent=5 // pred_region
        %s205 = ssub.s32 %s15, 1
        // Predicated region
        $region13: #{whole_neumf_forward.1} parent=11 // pred_check
          %p206 = pneg %p100
        $region14: #{whole_neumf_forward.1} parent=11 // pred_check_branch
          %208 = sbr.rel (%p206) target = $region16
        $region15: #{whole_neumf_forward.1} parent=11 // pred_region
          _
        $region16: #{whole_neumf_forward.1} parent=11 // pred_fallthru
          _
        // Predicated region
        $region17: #{whole_neumf_forward.1} parent=11 // pred_check
          %p209 = pneg %p121
        $region18: #{whole_neumf_forward.1} parent=11 // pred_check_branch
          %211 = sbr.rel (%p209) target = $region20
        $region19: #{whole_neumf_forward.1} parent=11 // pred_region
          _
        $region20: #{whole_neumf_forward.1} parent=11 // pred_fallthru
          _
        // Predicated region
        $region21: #{whole_neumf_forward.1} parent=11 // pred_check
          %p212 = pneg %p142
        $region22: #{whole_neumf_forward.1} parent=11 // pred_check_branch
          %214 = sbr.rel (%p212) target = $region24
        $region23: #{whole_neumf_forward.1} parent=11 // pred_region
          _
        $region24: #{whole_neumf_forward.1} parent=11 // pred_fallthru
          _
        // Predicated region
        $region25: #{whole_neumf_forward.1} parent=11 // pred_check
          %p215 = pneg %p163
        $region26: #{whole_neumf_forward.1} parent=11 // pred_check_branch
          %217 = sbr.rel (%p215) target = $region28
        $region27: #{whole_neumf_forward.1} parent=11 // pred_region
          _
        $region28: #{whole_neumf_forward.1} parent=11 // pred_fallthru
          _
      $region12: #{whole_neumf_forward.1} parent=5 // pred_fallthru
        _
      %p218 = scmp.lt.s32.totalorder %s15, 4
      // Predicated region
      $region29: #{whole_neumf_forward.1} parent=5 // pred_check
        %p219 = pneg %p218
      $region30: #{whole_neumf_forward.1} parent=5 // pred_check_branch
        %221 = sbr.rel (%p219) target = $region32
      $region31: #{whole_neumf_forward.1} parent=5 // pred_region
        // Predicated region
        $region33: #{whole_neumf_forward.1} parent=31 // pred_check
          %p222 = pneg %p47
        $region34: #{whole_neumf_forward.1} parent=31 // pred_check_branch
          %224 = sbr.rel (%p222) target = $region36
        $region35: #{whole_neumf_forward.1} parent=31 // pred_region
          %s225 = smul.u32 16, %s22
          %p226 = scmp.lt.s32.totalorder %s225, 31
          %s227 = scalar_select %p226, %s225, 31
          %s228 = smul.addr %s227, 8
          %s229 = scalar_lea.vmem %s0, %s228
          %s230 = smul.u32 16, %s22
        $region36: #{whole_neumf_forward.1} parent=31 // pred_fallthru
          _
        // Predicated region
        $region37: #{whole_neumf_forward.1} parent=31 // pred_check
          %p231 = pneg %p73
        $region38: #{whole_neumf_forward.1} parent=31 // pred_check_branch
          %233 = sbr.rel (%p231) target = $region40
        $region39: #{whole_neumf_forward.1} parent=31 // pred_region
          %s234 = smul.u32 16, %s23
          %p235 = scmp.lt.s32.totalorder %s234, 31
          %s236 = scalar_select %p235, %s234, 31
          %s237 = smul.addr %s236, 8
          %s238 = scalar_lea.vmem %s1, %s237
          %s239 = smul.u32 16, %s23
        $region40: #{whole_neumf_forward.1} parent=31 // pred_fallthru
          _
      $region32: #{whole_neumf_forward.1} parent=5 // pred_fallthru
        _
      %p240 = scmp.le.s32.totalorder 1, %s15
      %p241 = scmp.lt.s32.totalorder %s15, 5
      %p242 = pnand %p240, %p241
      %p243 = pneg %p242
      // Predicated region
      $region41: #{whole_neumf_forward.1} parent=5 // pred_check
        _
      $region42: #{whole_neumf_forward.1} parent=5 // pred_check_branch
        %245 = sbr.rel (%p242) target = $region44
      $region43: #{whole_neumf_forward.1} parent=5 // pred_region
        %s246 = ssub.s32 %s15, 1
        %s247 = smul.u32 16, %s24
        %p248 = scmp.lt.s32.totalorder %s247, 31
        %s249 = scalar_select %p248, %s247, 31
        %s250 = smul.addr %s249, 8
        %s251 = scalar_lea.vmem %s0, %s250
        %p252 = pneg %p53
        %p253 = pneg %p50
        %s254 = smul.u32 16, %s25
        %p255 = scmp.lt.s32.totalorder %s254, 31
        %s256 = scalar_select %p255, %s254, 31
        %s257 = smul.addr %s256, 8
        %s258 = scalar_lea.vmem %s1, %s257
        %p259 = pneg %p79
        %p260 = pneg %p76
        %p261 = pneg %p100
        %p262 = pneg %p97
        %p263 = pneg %p121
        %p264 = pneg %p118
        %p265 = pneg %p142
        %p266 = pneg %p139
        %p267 = pneg %p163
        %p268 = pneg %p160
        %p269 = pneg %p191
        %p270 = pneg %p188
        %s271 = sand.u32 %s178, 1
        %s272 = scalar_lea.sflag [#allocation3], %s271
        %s273 = sand.u32 %s178, 1
        %s274 = smul.addr %s273, 128
        %s275 = scalar_lea.vmem [#allocation2], %s274
        %s276 = smul.u32 16, %s24
        %p277 = scmp.lt.s32.totalorder %s276, 31
        %s278 = scalar_select %p277, %s276, 31
        %s279 = smul.addr %s278, 8
        %s280 = scalar_lea.vmem %s0, %s279
        %s281 = smul.u32 16, %s24
        %s282 = smul.u32 16, %s25
        %p283 = scmp.lt.s32.totalorder %s282, 31
        %s284 = scalar_select %p283, %s282, 31
        %s285 = smul.addr %s284, 8
        %s286 = scalar_lea.vmem %s1, %s285
        %s287 = smul.u32 16, %s25
        %s288 = smul.u32 16, %s24
        %v289 = vld [vmem:[%s280] sm:$0xff]
        %v290 = vld [vmem:[%s280 + $0x8] sm:$0xff]
        %v291 = vld [vmem:[%s280 + $0x10] sm:$0xff]
        %v292 = vld [vmem:[%s280 + $0x18] sm:$0xff]
        %v293 = vld [vmem:[%s280 + $0x20] sm:$0xff]
        %v294 = vld [vmem:[%s280 + $0x28] sm:$0xff]
        %v295 = vld [vmem:[%s280 + $0x30] sm:$0xff]
        %v296 = vld [vmem:[%s280 + $0x38] sm:$0xff]
        %v297 = vld [vmem:[%s280 + $0x40] sm:$0xff]
        %v298 = vld [vmem:[%s280 + $0x48] sm:$0xff]
        %v299 = vld [vmem:[%s280 + $0x50] sm:$0xff]
        %v300 = vld [vmem:[%s280 + $0x58] sm:$0xff]
        %v301 = vld [vmem:[%s280 + $0x60] sm:$0xff]
        %v302 = vld [vmem:[%s280 + $0x68] sm:$0xff]
        %v303 = vld [vmem:[%s280 + $0x70] sm:$0xff]
        %v304 = vld [vmem:[%s280 + $0x78] sm:$0xff]
        %v305 = vld [vmem:[%s286] sm:$0xff]
        %v306 = vld [vmem:[%s286 + $0x8] sm:$0xff]
        %v307 = vld [vmem:[%s286 + $0x10] sm:$0xff]
        %v308 = vld [vmem:[%s286 + $0x18] sm:$0xff]
        %v309 = vld [vmem:[%s286 + $0x20] sm:$0xff]
        %v310 = vld [vmem:[%s286 + $0x28] sm:$0xff]
        %v311 = vld [vmem:[%s286 + $0x30] sm:$0xff]
        %v312 = vld [vmem:[%s286 + $0x38] sm:$0xff]
        %v313 = vld [vmem:[%s286 + $0x40] sm:$0xff]
        %v314 = vld [vmem:[%s286 + $0x48] sm:$0xff]
        %v315 = vld [vmem:[%s286 + $0x50] sm:$0xff]
        %v316 = vld [vmem:[%s286 + $0x58] sm:$0xff]
        %v317 = vld [vmem:[%s286 + $0x60] sm:$0xff]
        %v318 = vld [vmem:[%s286 + $0x68] sm:$0xff]
        %v319 = vld [vmem:[%s286 + $0x70] sm:$0xff]
        %v320 = vld [vmem:[%s286 + $0x78] sm:$0xff]
        %v321 = vld [vmem:[%s4] sm:$0x1]
        %v322 = vld [vmem:[%s5] sm:$0x1]
        %v323 = vld [vmem:[%s2] sm:$0xff]
        %v324 = vld [vmem:[%s2 + $0x8] sm:$0xff]
        %v325 = vld [vmem:[%s2 + $0x10] sm:$0xff]
        %v326 = vld [vmem:[%s2 + $0x18] sm:$0xff]
        %vm327 = vcmask 261120
        %v329 = vsel %vm327, %v321, 0
        %v332 = vsel %vm327, %v323, 0
        %v335 = vsel %vm327, %v324, 0
        %v338 = vsel %vm327, %v325, 0
        %v341 = vsel %vm327, %v326, 0
        %343 = vmatpush.xpose.msra.mxu0 0.0
        %344 = vmatpush.xpose.msra.mxu0 0.0
        %345 = vmatpush.xpose.msra.mxu0 0.0
        %346 = vmatpush.xpose.msra.mxu0 0.0
        %347 = vmatpush.xpose.msra.mxu0 0.0
        %348 = vmatpush.xpose.msra.mxu0 0.0
        %349 = vmatpush.xpose.msra.mxu0 0.0
        %350 = vmatpush.xpose.msra.mxu0 0.0
        %351 = vmatpush.xpose.msra.mxu0 0.0
        %352 = vmatpush.xpose.msra.mxu0 0.0
        %353 = vmatpush.xpose.msra.mxu0 0.0
        %354 = vmatpush.xpose.msra.mxu0 0.0
        %355 = vmatpush.xpose.msra.mxu0 %v341
        %356 = vmatpush.xpose.msra.mxu0 %v338
        %357 = vmatpush.xpose.msra.mxu0 %v335
        %358 = vmatpush.xpose.msra.mxu0 %v332
        %359 = vmatmul.f32.gmra.mxu0 %v329
        %v360 = vpop.f32.mrf.mxu0
        %v361 = vadd.f32 0.0, %v360
        %362 = vdwg.mxu0
        %v363 = vld [vmem:[%s3] sm:$0xff]
        %v364 = vld [vmem:[%s3 + $0x8] sm:$0xff]
        %v365 = vld [vmem:[%s3 + $0x10] sm:$0xff]
        %v366 = vld [vmem:[%s3 + $0x18] sm:$0xff]
        %v368 = vsel %vm327, %v363, 0
        %v371 = vsel %vm327, %v364, 0
        %v374 = vsel %vm327, %v365, 0
        %v377 = vsel %vm327, %v366, 0
        %379 = vmatpush.xpose.msra.mxu0 0.0
        %380 = vmatpush.xpose.msra.mxu0 0.0
        %381 = vmatpush.xpose.msra.mxu0 0.0
        %382 = vmatpush.xpose.msra.mxu0 0.0
        %383 = vmatpush.xpose.msra.mxu0 0.0
        %384 = vmatpush.xpose.msra.mxu0 0.0
        %385 = vmatpush.xpose.msra.mxu0 0.0
        %386 = vmatpush.xpose.msra.mxu0 0.0
        %387 = vmatpush.xpose.msra.mxu0 0.0
        %388 = vmatpush.xpose.msra.mxu0 0.0
        %389 = vmatpush.xpose.msra.mxu0 0.0
        %390 = vmatpush.xpose.msra.mxu0 0.0
        %391 = vmatpush.xpose.msra.mxu0 %v377
        %392 = vmatpush.xpose.msra.mxu0 %v374
        %393 = vmatpush.xpose.msra.mxu0 %v371
        %394 = vmatpush.xpose.msra.mxu0 %v368
        %395 = vmatmul.f32.gmra.mxu0 %v329
        %v396 = vpop.f32.mrf.mxu0
        %v397 = vadd.f32 0.0, %v396
        %398 = vdwg.mxu0
        %v399 = vmax.f32 %v289, 0.0
        %v400 = vmax.f32 %v290, 0.0
        %v401 = vmax.f32 %v291, 0.0
        %v402 = vmax.f32 %v292, 0.0
        %v403 = vmax.f32 %v293, 0.0
        %v404 = vmax.f32 %v294, 0.0
        %v405 = vmax.f32 %v295, 0.0
        %v406 = vmax.f32 %v296, 0.0
        %v407 = vmax.f32 %v297, 0.0
        %v408 = vmax.f32 %v298, 0.0
        %v409 = vmax.f32 %v299, 0.0
        %v410 = vmax.f32 %v300, 0.0
        %v411 = vmax.f32 %v301, 0.0
        %v412 = vmax.f32 %v302, 0.0
        %v413 = vmax.f32 %v303, 0.0
        %v414 = vmax.f32 %v304, 0.0
        %v415 = vperm.slane %v361, 0
        %v416 = vmul.f32 %v399, %v415
        %v417 = vmul.f32 %v400, %v415
        %v418 = vmul.f32 %v401, %v415
        %v419 = vmul.f32 %v402, %v415
        %v420 = vmul.f32 %v403, %v415
        %v421 = vmul.f32 %v404, %v415
        %v422 = vmul.f32 %v405, %v415
        %v423 = vmul.f32 %v406, %v415
        %v424 = vmul.f32 %v407, %v415
        %v425 = vmul.f32 %v408, %v415
        %v426 = vmul.f32 %v409, %v415
        %v427 = vmul.f32 %v410, %v415
        %v428 = vmul.f32 %v411, %v415
        %v429 = vmul.f32 %v412, %v415
        %v430 = vmul.f32 %v413, %v415
        %v431 = vmul.f32 %v414, %v415
        %v432 = vsel %vm327, %v416, 0.0
        %433 = vadd.xlane.f32.xlu0 %v432
        %v434 = vpop.xlane.xlu0 %433
        %v435 = vsel %vm327, %v417, 0.0
        %436 = vadd.xlane.f32.xlu0 %v435
        %v437 = vpop.xlane.xlu0 %436
        %v438 = vsel %vm327, %v418, 0.0
        %439 = vadd.xlane.f32.xlu0 %v438
        %v440 = vpop.xlane.xlu0 %439
        %v441 = vsel %vm327, %v419, 0.0
        %442 = vadd.xlane.f32.xlu0 %v441
        %v443 = vpop.xlane.xlu0 %442
        %v444 = vsel %vm327, %v420, 0.0
        %445 = vadd.xlane.f32.xlu0 %v444
        %v446 = vpop.xlane.xlu0 %445
        %v447 = vsel %vm327, %v421, 0.0
        %448 = vadd.xlane.f32.xlu0 %v447
        %v449 = vpop.xlane.xlu0 %448
        %v450 = vsel %vm327, %v422, 0.0
        %451 = vadd.xlane.f32.xlu0 %v450
        %v452 = vpop.xlane.xlu0 %451
        %v453 = vsel %vm327, %v423, 0.0
        %454 = vadd.xlane.f32.xlu0 %v453
        %v455 = vpop.xlane.xlu0 %454
        %v456 = vsel %vm327, %v424, 0.0
        %457 = vadd.xlane.f32.xlu0 %v456
        %v458 = vpop.xlane.xlu0 %457
        %v459 = vsel %vm327, %v425, 0.0
        %460 = vadd.xlane.f32.xlu0 %v459
        %v461 = vpop.xlane.xlu0 %460
        %v462 = vsel %vm327, %v426, 0.0
        %463 = vadd.xlane.f32.xlu0 %v462
        %v464 = vpop.xlane.xlu0 %463
        %v465 = vsel %vm327, %v427, 0.0
        %466 = vadd.xlane.f32.xlu0 %v465
        %v467 = vpop.xlane.xlu0 %466
        %v468 = vsel %vm327, %v428, 0.0
        %469 = vadd.xlane.f32.xlu0 %v468
        %v470 = vpop.xlane.xlu0 %469
        %v471 = vsel %vm327, %v429, 0.0
        %472 = vadd.xlane.f32.xlu0 %v471
        %v473 = vpop.xlane.xlu0 %472
        %v474 = vsel %vm327, %v430, 0.0
        %475 = vadd.xlane.f32.xlu0 %v474
        %v476 = vpop.xlane.xlu0 %475
        %v477 = vsel %vm327, %v431, 0.0
        %478 = vadd.xlane.f32.xlu0 %v477
        %v479 = vpop.xlane.xlu0 %478
        %v480 = vmax.f32 %v305, 0.0
        %v481 = vmax.f32 %v306, 0.0
        %v482 = vmax.f32 %v307, 0.0
        %v483 = vmax.f32 %v308, 0.0
        %v484 = vmax.f32 %v309, 0.0
        %v485 = vmax.f32 %v310, 0.0
        %v486 = vmax.f32 %v311, 0.0
        %v487 = vmax.f32 %v312, 0.0
        %v488 = vmax.f32 %v313, 0.0
        %v489 = vmax.f32 %v314, 0.0
        %v490 = vmax.f32 %v315, 0.0
        %v491 = vmax.f32 %v316, 0.0
        %v492 = vmax.f32 %v317, 0.0
        %v493 = vmax.f32 %v318, 0.0
        %v494 = vmax.f32 %v319, 0.0
        %v495 = vmax.f32 %v320, 0.0
        %v497 = vsel %vm327, %v397, 0
        %v500 = vsel %vm327, %v480, 0
        %v503 = vsel %vm327, %v481, 0
        %v506 = vsel %vm327, %v482, 0
        %v509 = vsel %vm327, %v483, 0
        %v512 = vsel %vm327, %v484, 0
        %v515 = vsel %vm327, %v485, 0
        %v518 = vsel %vm327, %v486, 0
        %v521 = vsel %vm327, %v487, 0
        %v524 = vsel %vm327, %v488, 0
        %v527 = vsel %vm327, %v489, 0
        %v530 = vsel %vm327, %v490, 0
        %v533 = vsel %vm327, %v491, 0
        %v536 = vsel %vm327, %v492, 0
        %v539 = vsel %vm327, %v493, 0
        %v542 = vsel %vm327, %v494, 0
        %v545 = vsel %vm327, %v495, 0
        %547 = vmatpush.xpose.msra.mxu0 %v545
        %548 = vmatpush.xpose.msra.mxu0 %v542
        %549 = vmatpush.xpose.msra.mxu0 %v539
        %550 = vmatpush.xpose.msra.mxu0 %v536
        %551 = vmatpush.xpose.msra.mxu0 %v533
        %552 = vmatpush.xpose.msra.mxu0 %v530
        %553 = vmatpush.xpose.msra.mxu0 %v527
        %554 = vmatpush.xpose.msra.mxu0 %v524
        %555 = vmatpush.xpose.msra.mxu0 %v521
        %556 = vmatpush.xpose.msra.mxu0 %v518
        %557 = vmatpush.xpose.msra.mxu0 %v515
        %558 = vmatpush.xpose.msra.mxu0 %v512
        %559 = vmatpush.xpose.msra.mxu0 %v509
        %560 = vmatpush.xpose.msra.mxu0 %v506
        %561 = vmatpush.xpose.msra.mxu0 %v503
        %562 = vmatpush.xpose.msra.mxu0 %v500
        %563 = vmatmul.f32.gmra.mxu0 %v497
        %v564 = vpop.f32.mrf.mxu0
        %v565 = vadd.f32 0.0, %v564
        %566 = vdwg.mxu0
        %v568 = vperm.slane %v322, 0
        %v570 = vmul.f32 %v289, %v568
        %v571 = vmul.f32 %v290, %v568
        %v572 = vmul.f32 %v291, %v568
        %v573 = vmul.f32 %v292, %v568
        %v574 = vmul.f32 %v293, %v568
        %v575 = vmul.f32 %v294, %v568
        %v576 = vmul.f32 %v295, %v568
        %v577 = vmul.f32 %v296, %v568
        %v578 = vmul.f32 %v297, %v568
        %v579 = vmul.f32 %v298, %v568
        %v580 = vmul.f32 %v299, %v568
        %v581 = vmul.f32 %v300, %v568
        %v582 = vmul.f32 %v301, %v568
        %v583 = vmul.f32 %v302, %v568
        %v584 = vmul.f32 %v303, %v568
        %v585 = vmul.f32 %v304, %v568
        %v587 = vsel %vm327, %v570, 0
        %v590 = vsel %vm327, %v571, 0
        %v593 = vsel %vm327, %v572, 0
        %v596 = vsel %vm327, %v573, 0
        %v599 = vsel %vm327, %v574, 0
        %v602 = vsel %vm327, %v575, 0
        %v605 = vsel %vm327, %v576, 0
        %v608 = vsel %vm327, %v577, 0
        %v611 = vsel %vm327, %v578, 0
        %v614 = vsel %vm327, %v579, 0
        %v617 = vsel %vm327, %v580, 0
        %v620 = vsel %vm327, %v581, 0
        %v623 = vsel %vm327, %v582, 0
        %v626 = vsel %vm327, %v583, 0
        %v629 = vsel %vm327, %v584, 0
        %v632 = vsel %vm327, %v585, 0
        %v635 = vsel %vm327, %v305, 0
        %v638 = vsel %vm327, %v306, 0
        %v641 = vsel %vm327, %v307, 0
        %v644 = vsel %vm327, %v308, 0
        %v647 = vsel %vm327, %v309, 0
        %v650 = vsel %vm327, %v310, 0
        %v653 = vsel %vm327, %v311, 0
        %v656 = vsel %vm327, %v312, 0
        %v659 = vsel %vm327, %v313, 0
        %v662 = vsel %vm327, %v314, 0
        %v665 = vsel %vm327, %v315, 0
        %v668 = vsel %vm327, %v316, 0
        %v671 = vsel %vm327, %v317, 0
        %v674 = vsel %vm327, %v318, 0
        %v677 = vsel %vm327, %v319, 0
        %v680 = vsel %vm327, %v320, 0
        %682 = vmatpush.xpose.msra.mxu0 %v680
        %683 = vmatpush.xpose.msra.mxu0 %v677
        %684 = vmatpush.xpose.msra.mxu0 %v674
        %685 = vmatpush.xpose.msra.mxu0 %v671
        %686 = vmatpush.xpose.msra.mxu0 %v668
        %687 = vmatpush.xpose.msra.mxu0 %v665
        %688 = vmatpush.xpose.msra.mxu0 %v662
        %689 = vmatpush.xpose.msra.mxu0 %v659
        %690 = vmatpush.xpose.msra.mxu0 %v656
        %691 = vmatpush.xpose.msra.mxu0 %v653
        %692 = vmatpush.xpose.msra.mxu0 %v650
        %693 = vmatpush.xpose.msra.mxu0 %v647
        %694 = vmatpush.xpose.msra.mxu0 %v644
        %695 = vmatpush.xpose.msra.mxu0 %v641
        %696 = vmatpush.xpose.msra.mxu0 %v638
        %697 = vmatpush.xpose.msra.mxu0 %v635
        %698 = vmatmul.f32.gmra.mxu0 %v587
        %v699 = vpop.f32.mrf.mxu0
        %v700 = vadd.f32 %v434, %v699
        %701 = vmatmul.f32.gmra.mxu0 %v590
        %v702 = vpop.f32.mrf.mxu0
        %v703 = vadd.f32 %v437, %v702
        %704 = vmatmul.f32.gmra.mxu0 %v593
        %v705 = vpop.f32.mrf.mxu0
        %v706 = vadd.f32 %v440, %v705
        %707 = vmatmul.f32.gmra.mxu0 %v596
        %v708 = vpop.f32.mrf.mxu0
        %v709 = vadd.f32 %v443, %v708
        %710 = vmatmul.f32.gmra.mxu0 %v599
        %v711 = vpop.f32.mrf.mxu0
        %v712 = vadd.f32 %v446, %v711
        %713 = vmatmul.f32.gmra.mxu0 %v602
        %v714 = vpop.f32.mrf.mxu0
        %v715 = vadd.f32 %v449, %v714
        %716 = vmatmul.f32.gmra.mxu0 %v605
        %v717 = vpop.f32.mrf.mxu0
        %v718 = vadd.f32 %v452, %v717
        %719 = vmatmul.f32.gmra.mxu0 %v608
        %v720 = vpop.f32.mrf.mxu0
        %v721 = vadd.f32 %v455, %v720
        %722 = vmatmul.f32.gmra.mxu0 %v611
        %v723 = vpop.f32.mrf.mxu0
        %v724 = vadd.f32 %v458, %v723
        %725 = vmatmul.f32.gmra.mxu0 %v614
        %v726 = vpop.f32.mrf.mxu0
        %v727 = vadd.f32 %v461, %v726
        %728 = vmatmul.f32.gmra.mxu0 %v617
        %v729 = vpop.f32.mrf.mxu0
        %v730 = vadd.f32 %v464, %v729
        %731 = vmatmul.f32.gmra.mxu0 %v620
        %v732 = vpop.f32.mrf.mxu0
        %v733 = vadd.f32 %v467, %v732
        %734 = vmatmul.f32.gmra.mxu0 %v623
        %v735 = vpop.f32.mrf.mxu0
        %v736 = vadd.f32 %v470, %v735
        %737 = vmatmul.f32.gmra.mxu0 %v626
        %v738 = vpop.f32.mrf.mxu0
        %v739 = vadd.f32 %v473, %v738
        %740 = vmatmul.f32.gmra.mxu0 %v629
        %v741 = vpop.f32.mrf.mxu0
        %v742 = vadd.f32 %v476, %v741
        %743 = vmatmul.f32.gmra.mxu0 %v632
        %v744 = vpop.f32.mrf.mxu0
        %v745 = vadd.f32 %v479, %v744
        %746 = vdwg.mxu0
        %v747 = vperm.slane %v565, 0
        %v748 = vadd.f32 %v700, %v747
        %v749 = vadd.f32 %v703, %v747
        %v750 = vadd.f32 %v706, %v747
        %v751 = vadd.f32 %v709, %v747
        %v752 = vadd.f32 %v712, %v747
        %v753 = vadd.f32 %v715, %v747
        %v754 = vadd.f32 %v718, %v747
        %v755 = vadd.f32 %v721, %v747
        %v756 = vadd.f32 %v724, %v747
        %v757 = vadd.f32 %v727, %v747
        %v758 = vadd.f32 %v730, %v747
        %v759 = vadd.f32 %v733, %v747
        %v760 = vadd.f32 %v736, %v747
        %v761 = vadd.f32 %v739, %v747
        %v762 = vadd.f32 %v742, %v747
        %v763 = vadd.f32 %v745, %v747
        %v764 = vxor.u32 %v748, 2147483648
        %v765 = vxor.u32 %v749, 2147483648
        %v766 = vxor.u32 %v750, 2147483648
        %v767 = vxor.u32 %v751, 2147483648
        %v768 = vxor.u32 %v752, 2147483648
        %v769 = vxor.u32 %v753, 2147483648
        %v770 = vxor.u32 %v754, 2147483648
        %v771 = vxor.u32 %v755, 2147483648
        %v772 = vxor.u32 %v756, 2147483648
        %v773 = vxor.u32 %v757, 2147483648
        %v774 = vxor.u32 %v758, 2147483648
        %v775 = vxor.u32 %v759, 2147483648
        %v776 = vxor.u32 %v760, 2147483648
        %v777 = vxor.u32 %v761, 2147483648
        %v778 = vxor.u32 %v762, 2147483648
        %v779 = vxor.u32 %v763, 2147483648
        %v780 = vmul.f32 %v764, 1.442695
        %v781 = vpow.pop %v780
        %v782 = vmul.f32 %v765, 1.442695
        %v783 = vpow.pop %v782
        %v784 = vmul.f32 %v766, 1.442695
        %v785 = vpow.pop %v784
        %v786 = vmul.f32 %v767, 1.442695
        %v787 = vpow.pop %v786
        %v788 = vmul.f32 %v768, 1.442695
        %v789 = vpow.pop %v788
        %v790 = vmul.f32 %v769, 1.442695
        %v791 = vpow.pop %v790
        %v792 = vmul.f32 %v770, 1.442695
        %v793 = vpow.pop %v792
        %v794 = vmul.f32 %v771, 1.442695
        %v795 = vpow.pop %v794
        %v796 = vmul.f32 %v772, 1.442695
        %v797 = vpow.pop %v796
        %v798 = vmul.f32 %v773, 1.442695
        %v799 = vpow.pop %v798
        %v800 = vmul.f32 %v774, 1.442695
        %v801 = vpow.pop %v800
        %v802 = vmul.f32 %v775, 1.442695
        %v803 = vpow.pop %v802
        %v804 = vmul.f32 %v776, 1.442695
        %v805 = vpow.pop %v804
        %v806 = vmul.f32 %v777, 1.442695
        %v807 = vpow.pop %v806
        %v808 = vmul.f32 %v778, 1.442695
        %v809 = vpow.pop %v808
        %v810 = vmul.f32 %v779, 1.442695
        %v811 = vpow.pop %v810
        %v812 = vadd.f32 %v781, 1.0
        %v813 = vadd.f32 %v783, 1.0
        %v814 = vadd.f32 %v785, 1.0
        %v815 = vadd.f32 %v787, 1.0
        %v816 = vadd.f32 %v789, 1.0
        %v817 = vadd.f32 %v791, 1.0
        %v818 = vadd.f32 %v793, 1.0
        %v819 = vadd.f32 %v795, 1.0
        %v820 = vadd.f32 %v797, 1.0
        %v821 = vadd.f32 %v799, 1.0
        %v822 = vadd.f32 %v801, 1.0
        %v823 = vadd.f32 %v803, 1.0
        %v824 = vadd.f32 %v805, 1.0
        %v825 = vadd.f32 %v807, 1.0
        %v826 = vadd.f32 %v809, 1.0
        %v827 = vadd.f32 %v811, 1.0
        %v828 = vrcp.pop %v812
        %v829 = vmul.f32 %v812, %v828
        %v830 = vsub.f32 1.0, %v829
        %v831 = vmul.f32 %v828, %v830
        %v832 = vadd.f32 %v828, %v831
        %vm833 = vweird.f32 %v812
        %vm834 = vweird.f32 %v828
        %vm835 = vmor %vm833, %vm834
        %v836 = vsel %vm835, %v828, %v832
        %v837 = vand.u32 2147483647, %v812
        %vm838 = vcmp.eq.f32.partialorder %v837, 8.507059e+37
        %v839 = vand.u32 %v812, 2147483648
        %v840 = vor.u32 1.1754944e-38, %v839
        %v841 = vsel %vm838, %v840, %v836
        %v842 = vmul.f32 1.0, %v841
        %v843 = vrcp.pop %v813
        %v844 = vmul.f32 %v813, %v843
        %v845 = vsub.f32 1.0, %v844
        %v846 = vmul.f32 %v843, %v845
        %v847 = vadd.f32 %v843, %v846
        %vm848 = vweird.f32 %v813
        %vm849 = vweird.f32 %v843
        %vm850 = vmor %vm848, %vm849
        %v851 = vsel %vm850, %v843, %v847
        %v852 = vand.u32 2147483647, %v813
        %vm853 = vcmp.eq.f32.partialorder %v852, 8.507059e+37
        %v854 = vand.u32 %v813, 2147483648
        %v855 = vor.u32 1.1754944e-38, %v854
        %v856 = vsel %vm853, %v855, %v851
        %v857 = vmul.f32 1.0, %v856
        %v858 = vrcp.pop %v814
        %v859 = vmul.f32 %v814, %v858
        %v860 = vsub.f32 1.0, %v859
        %v861 = vmul.f32 %v858, %v860
        %v862 = vadd.f32 %v858, %v861
        %vm863 = vweird.f32 %v814
        %vm864 = vweird.f32 %v858
        %vm865 = vmor %vm863, %vm864
        %v866 = vsel %vm865, %v858, %v862
        %v867 = vand.u32 2147483647, %v814
        %vm868 = vcmp.eq.f32.partialorder %v867, 8.507059e+37
        %v869 = vand.u32 %v814, 2147483648
        %v870 = vor.u32 1.1754944e-38, %v869
        %v871 = vsel %vm868, %v870, %v866
        %v872 = vmul.f32 1.0, %v871
        %v873 = vrcp.pop %v815
        %v874 = vmul.f32 %v815, %v873
        %v875 = vsub.f32 1.0, %v874
        %v876 = vmul.f32 %v873, %v875
        %v877 = vadd.f32 %v873, %v876
        %vm878 = vweird.f32 %v815
        %vm879 = vweird.f32 %v873
        %vm880 = vmor %vm878, %vm879
        %v881 = vsel %vm880, %v873, %v877
        %v882 = vand.u32 2147483647, %v815
        %vm883 = vcmp.eq.f32.partialorder %v882, 8.507059e+37
        %v884 = vand.u32 %v815, 2147483648
        %v885 = vor.u32 1.1754944e-38, %v884
        %v886 = vsel %vm883, %v885, %v881
        %v887 = vmul.f32 1.0, %v886
        %v888 = vrcp.pop %v816
        %v889 = vmul.f32 %v816, %v888
        %v890 = vsub.f32 1.0, %v889
        %v891 = vmul.f32 %v888, %v890
        %v892 = vadd.f32 %v888, %v891
        %vm893 = vweird.f32 %v816
        %vm894 = vweird.f32 %v888
        %vm895 = vmor %vm893, %vm894
        %v896 = vsel %vm895, %v888, %v892
        %v897 = vand.u32 2147483647, %v816
        %vm898 = vcmp.eq.f32.partialorder %v897, 8.507059e+37
        %v899 = vand.u32 %v816, 2147483648
        %v900 = vor.u32 1.1754944e-38, %v899
        %v901 = vsel %vm898, %v900, %v896
        %v902 = vmul.f32 1.0, %v901
        %v903 = vrcp.pop %v817
        %v904 = vmul.f32 %v817, %v903
        %v905 = vsub.f32 1.0, %v904
        %v906 = vmul.f32 %v903, %v905
        %v907 = vadd.f32 %v903, %v906
        %vm908 = vweird.f32 %v817
        %vm909 = vweird.f32 %v903
        %vm910 = vmor %vm908, %vm909
        %v911 = vsel %vm910, %v903, %v907
        %v912 = vand.u32 2147483647, %v817
        %vm913 = vcmp.eq.f32.partialorder %v912, 8.507059e+37
        %v914 = vand.u32 %v817, 2147483648
        %v915 = vor.u32 1.1754944e-38, %v914
        %v916 = vsel %vm913, %v915, %v911
        %v917 = vmul.f32 1.0, %v916
        %v918 = vrcp.pop %v818
        %v919 = vmul.f32 %v818, %v918
        %v920 = vsub.f32 1.0, %v919
        %v921 = vmul.f32 %v918, %v920
        %v922 = vadd.f32 %v918, %v921
        %vm923 = vweird.f32 %v818
        %vm924 = vweird.f32 %v918
        %vm925 = vmor %vm923, %vm924
        %v926 = vsel %vm925, %v918, %v922
        %v927 = vand.u32 2147483647, %v818
        %vm928 = vcmp.eq.f32.partialorder %v927, 8.507059e+37
        %v929 = vand.u32 %v818, 2147483648
        %v930 = vor.u32 1.1754944e-38, %v929
        %v931 = vsel %vm928, %v930, %v926
        %v932 = vmul.f32 1.0, %v931
        %v933 = vrcp.pop %v819
        %v934 = vmul.f32 %v819, %v933
        %v935 = vsub.f32 1.0, %v934
        %v936 = vmul.f32 %v933, %v935
        %v937 = vadd.f32 %v933, %v936
        %vm938 = vweird.f32 %v819
        %vm939 = vweird.f32 %v933
        %vm940 = vmor %vm938, %vm939
        %v941 = vsel %vm940, %v933, %v937
        %v942 = vand.u32 2147483647, %v819
        %vm943 = vcmp.eq.f32.partialorder %v942, 8.507059e+37
        %v944 = vand.u32 %v819, 2147483648
        %v945 = vor.u32 1.1754944e-38, %v944
        %v946 = vsel %vm943, %v945, %v941
        %v947 = vmul.f32 1.0, %v946
        %v948 = vrcp.pop %v820
        %v949 = vmul.f32 %v820, %v948
        %v950 = vsub.f32 1.0, %v949
        %v951 = vmul.f32 %v948, %v950
        %v952 = vadd.f32 %v948, %v951
        %vm953 = vweird.f32 %v820
        %vm954 = vweird.f32 %v948
        %vm955 = vmor %vm953, %vm954
        %v956 = vsel %vm955, %v948, %v952
        %v957 = vand.u32 2147483647, %v820
        %vm958 = vcmp.eq.f32.partialorder %v957, 8.507059e+37
        %v959 = vand.u32 %v820, 2147483648
        %v960 = vor.u32 1.1754944e-38, %v959
        %v961 = vsel %vm958, %v960, %v956
        %v962 = vmul.f32 1.0, %v961
        %v963 = vrcp.pop %v821
        %v964 = vmul.f32 %v821, %v963
        %v965 = vsub.f32 1.0, %v964
        %v966 = vmul.f32 %v963, %v965
        %v967 = vadd.f32 %v963, %v966
        %vm968 = vweird.f32 %v821
        %vm969 = vweird.f32 %v963
        %vm970 = vmor %vm968, %vm969
        %v971 = vsel %vm970, %v963, %v967
        %v972 = vand.u32 2147483647, %v821
        %vm973 = vcmp.eq.f32.partialorder %v972, 8.507059e+37
        %v974 = vand.u32 %v821, 2147483648
        %v975 = vor.u32 1.1754944e-38, %v974
        %v976 = vsel %vm973, %v975, %v971
        %v977 = vmul.f32 1.0, %v976
        %v978 = vrcp.pop %v822
        %v979 = vmul.f32 %v822, %v978
        %v980 = vsub.f32 1.0, %v979
        %v981 = vmul.f32 %v978, %v980
        %v982 = vadd.f32 %v978, %v981
        %vm983 = vweird.f32 %v822
        %vm984 = vweird.f32 %v978
        %vm985 = vmor %vm983, %vm984
        %v986 = vsel %vm985, %v978, %v982
        %v987 = vand.u32 2147483647, %v822
        %vm988 = vcmp.eq.f32.partialorder %v987, 8.507059e+37
        %v989 = vand.u32 %v822, 2147483648
        %v990 = vor.u32 1.1754944e-38, %v989
        %v991 = vsel %vm988, %v990, %v986
        %v992 = vmul.f32 1.0, %v991
        %v993 = vrcp.pop %v823
        %v994 = vmul.f32 %v823, %v993
        %v995 = vsub.f32 1.0, %v994
        %v996 = vmul.f32 %v993, %v995
        %v997 = vadd.f32 %v993, %v996
        %vm998 = vweird.f32 %v823
        %vm999 = vweird.f32 %v993
        %vm1000 = vmor %vm998, %vm999
        %v1001 = vsel %vm1000, %v993, %v997
        %v1002 = vand.u32 2147483647, %v823
        %vm1003 = vcmp.eq.f32.partialorder %v1002, 8.507059e+37
        %v1004 = vand.u32 %v823, 2147483648
        %v1005 = vor.u32 1.1754944e-38, %v1004
        %v1006 = vsel %vm1003, %v1005, %v1001
        %v1007 = vmul.f32 1.0, %v1006
        %v1008 = vrcp.pop %v824
        %v1009 = vmul.f32 %v824, %v1008
        %v1010 = vsub.f32 1.0, %v1009
        %v1011 = vmul.f32 %v1008, %v1010
        %v1012 = vadd.f32 %v1008, %v1011
        %vm1013 = vweird.f32 %v824
        %vm1014 = vweird.f32 %v1008
        %vm1015 = vmor %vm1013, %vm1014
        %v1016 = vsel %vm1015, %v1008, %v1012
        %v1017 = vand.u32 2147483647, %v824
        %vm1018 = vcmp.eq.f32.partialorder %v1017, 8.507059e+37
        %v1019 = vand.u32 %v824, 2147483648
        %v1020 = vor.u32 1.1754944e-38, %v1019
        %v1021 = vsel %vm1018, %v1020, %v1016
        %v1022 = vmul.f32 1.0, %v1021
        %v1023 = vrcp.pop %v825
        %v1024 = vmul.f32 %v825, %v1023
        %v1025 = vsub.f32 1.0, %v1024
        %v1026 = vmul.f32 %v1023, %v1025
        %v1027 = vadd.f32 %v1023, %v1026
        %vm1028 = vweird.f32 %v825
        %vm1029 = vweird.f32 %v1023
        %vm1030 = vmor %vm1028, %vm1029
        %v1031 = vsel %vm1030, %v1023, %v1027
        %v1032 = vand.u32 2147483647, %v825
        %vm1033 = vcmp.eq.f32.partialorder %v1032, 8.507059e+37
        %v1034 = vand.u32 %v825, 2147483648
        %v1035 = vor.u32 1.1754944e-38, %v1034
        %v1036 = vsel %vm1033, %v1035, %v1031
        %v1037 = vmul.f32 1.0, %v1036
        %v1038 = vrcp.pop %v826
        %v1039 = vmul.f32 %v826, %v1038
        %v1040 = vsub.f32 1.0, %v1039
        %v1041 = vmul.f32 %v1038, %v1040
        %v1042 = vadd.f32 %v1038, %v1041
        %vm1043 = vweird.f32 %v826
        %vm1044 = vweird.f32 %v1038
        %vm1045 = vmor %vm1043, %vm1044
        %v1046 = vsel %vm1045, %v1038, %v1042
        %v1047 = vand.u32 2147483647, %v826
        %vm1048 = vcmp.eq.f32.partialorder %v1047, 8.507059e+37
        %v1049 = vand.u32 %v826, 2147483648
        %v1050 = vor.u32 1.1754944e-38, %v1049
        %v1051 = vsel %vm1048, %v1050, %v1046
        %v1052 = vmul.f32 1.0, %v1051
        %v1053 = vrcp.pop %v827
        %v1054 = vmul.f32 %v827, %v1053
        %v1055 = vsub.f32 1.0, %v1054
        %v1056 = vmul.f32 %v1053, %v1055
        %v1057 = vadd.f32 %v1053, %v1056
        %vm1058 = vweird.f32 %v827
        %vm1059 = vweird.f32 %v1053
        %vm1060 = vmor %vm1058, %vm1059
        %v1061 = vsel %vm1060, %v1053, %v1057
        %v1062 = vand.u32 2147483647, %v827
        %vm1063 = vcmp.eq.f32.partialorder %v1062, 8.507059e+37
        %v1064 = vand.u32 %v827, 2147483648
        %v1065 = vor.u32 1.1754944e-38, %v1064
        %v1066 = vsel %vm1063, %v1065, %v1061
        %v1067 = vmul.f32 1.0, %v1066
        %1068 = vst [vmem:[%s275] sm:$0xff] %v842
        %1069 = vst [vmem:[%s275 + $0x8] sm:$0xff] %v857
        %1070 = vst [vmem:[%s275 + $0x10] sm:$0xff] %v872
        %1071 = vst [vmem:[%s275 + $0x18] sm:$0xff] %v887
        %1072 = vst [vmem:[%s275 + $0x20] sm:$0xff] %v902
        %1073 = vst [vmem:[%s275 + $0x28] sm:$0xff] %v917
        %1074 = vst [vmem:[%s275 + $0x30] sm:$0xff] %v932
        %1075 = vst [vmem:[%s275 + $0x38] sm:$0xff] %v947
        %1076 = vst [vmem:[%s275 + $0x40] sm:$0xff] %v962
        %1077 = vst [vmem:[%s275 + $0x48] sm:$0xff] %v977
        %1078 = vst [vmem:[%s275 + $0x50] sm:$0xff] %v992
        %1079 = vst [vmem:[%s275 + $0x58] sm:$0xff] %v1007
        %1080 = vst [vmem:[%s275 + $0x60] sm:$0xff] %v1022
        %1081 = vst [vmem:[%s275 + $0x68] sm:$0xff] %v1037
        %1082 = vst [vmem:[%s275 + $0x70] sm:$0xff] %v1052
        %1083 = vst [vmem:[%s275 + $0x78] sm:$0xff] %v1067
        %s1084 = sand.u32 %s178, 1
        %s1085 = scalar_lea.sflag [#allocation3], %s1084
        %s1086 = sand.u32 %s178, 1
        %s1087 = smul.addr %s1086, 128
        %s1088 = scalar_lea.vmem [#allocation2], %s1087
        // Predicated region
        $region45: #{whole_neumf_forward.1} parent=43 // pred_check
          %p1089 = pneg %p188
        $region46: #{whole_neumf_forward.1} parent=43 // pred_check_branch
          %1091 = sbr.rel (%p1089) target = $region48
        $region47: #{whole_neumf_forward.1} parent=43 // pred_region
          %s1092 = smul.u32 16, %s24
          %1094 = vsyncadd %s1085, 0
          %s1095 = smul.addr %s1092, 2
          %s1096 = sadd.s32 %s25, %s1095
          %s1097 = smul.addr %s1096, 8
          %s1098 = scalar_lea.hbm %s6, %s1097
          %s1099 = sshll.u32 %s1088, 4
          %s1100 = int_to_ptr.vmem [resolvable:$true] %s1099
          %s1101 = sshll.u32 %s1098, 4
          %s1102 = int_to_ptr.hbm [resolvable:$true] %s1101
          %1107 = dma.vmem_to_hbm [thread:$0]  %s1100, 2048, %s1102, %s1085, 128, 256, 8
        $region48: #{whole_neumf_forward.1} parent=43 // pred_fallthru
          _
      $region44: #{whole_neumf_forward.1} parent=5 // pred_fallthru
        _
      %p1108 = scmp.le.s32.totalorder 2, %s15
      // Predicated region
      $region49: #{whole_neumf_forward.1} parent=5 // pred_check
        %p1109 = pneg %p1108
      $region50: #{whole_neumf_forward.1} parent=5 // pred_check_branch
        %1111 = sbr.rel (%p1109) target = $region52
      $region51: #{whole_neumf_forward.1} parent=5 // pred_region
        %s1112 = ssub.s32 %s15, 2
        // Predicated region
        $region53: #{whole_neumf_forward.1} parent=51 // pred_check
          %p1113 = pneg %p194
        $region54: #{whole_neumf_forward.1} parent=51 // pred_check_branch
          %1115 = sbr.rel (%p1113) target = $region56
        $region55: #{whole_neumf_forward.1} parent=51 // pred_region
          %s1116 = sand.u32 %s179, 1
          %s1117 = scalar_lea.sflag [#allocation3], %s1116
          %s1118 = sand.u32 %s179, 1
          %s1119 = smul.addr %s1118, 128
          %s1120 = scalar_lea.vmem [#allocation2], %s1119
          %1122 = dma.done %s1117, 2048
        $region56: #{whole_neumf_forward.1} parent=51 // pred_fallthru
          _
      $region52: #{whole_neumf_forward.1} parent=5 // pred_fallthru
        _
    $region6: #{whole_neumf_forward.1} parent=1 // loop_footer
      %s19 = sadd.s32 1, %s15
    $region7: #{whole_neumf_forward.1} parent=1 // loop_footer_branch
      %14 = sbr.rel target = $region3
    $region8: #{whole_neumf_forward.1} parent=1 // loop_exit
      _
    %1123 = vsyncpa [#allocation3], 1
    %s1124 = scalar_lea.sflag [#allocation3], 1
    %1125 = vsyncpa %s1124, 1

</llo_original>
